<compile_context>
chip_gen: v7x
topology: tpu7x:2x2x1
jax: 0.10.0
libtpu: 0.0.40
codegen_flags: <defaults>
</compile_context>

<pallas_src>
import math

import jax
import jax.numpy as jnp
from jax.experimental import pallas as pl
from jax.experimental.pallas import tpu as pltpu


def _round_up(x, m):
    return ((x + m - 1) // m) * m


def _mlp_kernel(x_ref, w1t_ref, b1_ref, w2t_ref, b2_ref, o_ref):
    # x:   (tb, I)  f32      w1t: (I, Hp)  bf16     b1: (1, Hp) f32
    # w2t: (Hp, O)  bf16     b2:  (1, O)   f32      o:  (tb, O) f32
    x = x_ref[...].astype(jnp.bfloat16)                         # MXU-fed bf16
    h = jnp.dot(x, w1t_ref[...],
                preferred_element_type=jnp.float32)             # (tb, Hp) f32 acc
    h = jnp.maximum(h + b1_ref[...], 0.0)                       # bias + ReLU in f32
    o = jnp.dot(h.astype(jnp.bfloat16), w2t_ref[...],
                preferred_element_type=jnp.float32)             # (tb, O) f32 acc
    o_ref[...] = (o + b2_ref[...]).astype(o_ref.dtype)          # narrow (O-wide) store


def pack_params(w1, b1, w2, b2, *, lane=128):
    """One-time packing of PyTorch-layout params (do this at parameter
    creation / growNet time, NOT per forward call).

    w1: (H, I), b1: (H,), w2: (O, H), b2: (O,)  ->
      w1t: (I, Hp)  bf16, zero-padded hidden columns   (Hp = 128-padded H)
      b1p: (1, Hp)  f32,  zero-padded
      w2t: (Hp, O)  bf16, zero-padded hidden rows      (output stays O-wide)
      b2p: (1, O)   f32
    Zero-padding only the hidden axis keeps the math exact; the output axis
    is NOT padded so HBM writeback stays O-wide.
    """
    H, I = w1.shape
    O = w2.shape[0]
    Hp = _round_up(H, lane)

    w1f = jnp.asarray(w1, jnp.float32)
    w2f = jnp.asarray(w2, jnp.float32)

    w1t = jnp.zeros((I, Hp), jnp.bfloat16).at[:, :H].set(w1f.T.astype(jnp.bfloat16))
    b1p = jnp.zeros((1, Hp), jnp.float32).at[0, :H].set(jnp.asarray(b1, jnp.float32))
    w2t = jnp.zeros((Hp, O), jnp.bfloat16).at[:H, :].set(w2f.T.astype(jnp.bfloat16))
    b2p = jnp.asarray(b2, jnp.float32).reshape(1, O)
    return w1t, b1p, w2t, b2p


def _default_tiling():
    """Pick (batch tile, vmem_limit_bytes) from the chip's VMEM capacity.

    VMEM cost is ~2 KiB per batch row: the (tb, 4) f32 x tile occupies
    tb*512 B (each (8,4) chunk pads to an (8,128) VMEM tile) and the out
    tile is lane-padded to 128 in VMEM regardless of its 3-wide HBM shape;
    both are double-buffered.
    """
    try:
        vmem = int(pltpu.get_tpu_info().vmem_capacity_bytes)
    except Exception:
        vmem = 64 * 1024 * 1024                      # conservative (v7x-sized)
    if vmem >= 96 * 1024 * 1024:                     # v5e / v6e: 128 MiB VMEM
        return 16384, 80 * 1024 * 1024               # ~32 MiB working set
    return 8192, 48 * 1024 * 1024                    # v7x: 64 MiB VMEM


def growing_net_forward(x, params, *, block_b=None, vmem_limit_bytes=None):
    """x: (B, I) f32; params: output of pack_params; returns (B, O) f32."""
    w1t, b1, w2t, b2 = params
    x = jnp.asarray(x, jnp.float32)
    B, I = x.shape
    Hp, O = w2t.shape
    assert w1t.shape == (I, Hp) and b1.shape == (1, Hp) and b2.shape == (1, O)

    if block_b is None or vmem_limit_bytes is None:
        db, dv = _default_tiling()
        block_b = block_b or db
        vmem_limit_bytes = vmem_limit_bytes or dv

    # Batch tile: multiple of 8 (sublane) unless it covers the whole small
    # batch, and at least 2 grid steps whenever possible so both v7x
    # TensorCores get work under dimension_semantics=("parallel",).
    if B >= 16:
        tb = min(block_b, _round_up(pl.cdiv(B, 2), 8))
    else:
        tb = B                      # single block == full array dim (legal)
    grid = (pl.cdiv(B, tb),)

    # NOTE: the four parameter refs have a constant block index; default
    # double-buffering wastes only ~140 KB of VMEM, so we keep it for
    # robustness rather than forcing pl.Buffered(1).
    return pl.pallas_call(
        _mlp_kernel,
        out_shape=jax.ShapeDtypeStruct((B, O), jnp.float32),
        grid_spec=pltpu.PrefetchScalarGridSpec(
            num_scalar_prefetch=0,
            grid=grid,
            in_specs=[
                pl.BlockSpec((tb, I), lambda i: (i, 0)),      # x batch tile
                pl.BlockSpec((I, Hp), lambda i: (0, 0)),      # w1^T  (bf16)
                pl.BlockSpec((1, Hp), lambda i: (0, 0)),      # b1    (f32)
                pl.BlockSpec((Hp, O), lambda i: (0, 0)),      # w2^T  (bf16)
                pl.BlockSpec((1, O), lambda i: (0, 0)),       # b2    (f32)
            ],
            out_specs=pl.BlockSpec((tb, O), lambda i: (i, 0)),  # narrow out
        ),
        compiler_params=pltpu.CompilerParams(
            dimension_semantics=("parallel",),   # shards batch across v7x TCs
            vmem_limit_bytes=vmem_limit_bytes,
        ),
    )(x, w1t, b1, w2t, b2)


def kaiming_uniform_relu(key, shape):
    """torch.nn.init.kaiming_uniform_(mode='fan_in', nonlinearity='relu')."""
    fan_in = shape[1]
    bound = math.sqrt(2.0) * math.sqrt(3.0 / fan_in)
    return jax.random.uniform(key, shape, jnp.float32, minval=-bound, maxval=bound)


if __name__ == "__main__":
    state_dim = 4      # I
    hidden_dim = 5     # H (fixed in module __init__)
    out_dim = 3        # O
    batch = 256        # small batch; tb=128 -> grid of 2 steps

    key = jax.random.PRNGKey(0)
    k_x, k_w1, k_b1, k_w2, k_b2 = jax.random.split(key, 5)

    x = jax.random.normal(k_x, (batch, state_dim), jnp.float32)
    w1 = kaiming_uniform_relu(k_w1, (hidden_dim, state_dim))     # l1.weight
    w2 = kaiming_uniform_relu(k_w2, (out_dim, hidden_dim))       # l2.weight
    # Module inits biases to zero; use nonzero here so the bias path is
    # actually exercised by the asserts (forward math is identical).
    b1 = 0.1 * jax.random.normal(k_b1, (hidden_dim,), jnp.float32)
    b2 = 0.1 * jax.random.normal(k_b2, (out_dim,), jnp.float32)

    # One-time packing (outside the hot path).
    params = pack_params(w1, b1, w2, b2)

    out = growing_net_forward(x, params)
    out = jax.block_until_ready(out)
    assert out.shape == (batch, out_dim)

    # Reference 1: same numerics as the kernel (bf16 operands, f32 accumulate,
    # f32 bias/ReLU) -- tight tolerance.
    xb = x.astype(jnp.bfloat16)
    w1b = jnp.asarray(w1).astype(jnp.bfloat16)
    w2b = jnp.asarray(w2).astype(jnp.bfloat16)
    h = jnp.maximum(jnp.dot(xb, w1b.T, preferred_element_type=jnp.float32) + b1, 0.0)
    ref_bf16 = jnp.dot(h.astype(jnp.bfloat16), w2b.T,
                       preferred_element_type=jnp.float32) + b2
    assert bool(jnp.allclose(out, ref_bf16, atol=1e-4, rtol=1e-4))

    # Reference 2: full-f32 PyTorch-equivalent forward (loose tolerance: the
    # kernel feeds the MXU bf16 while accumulating in f32).
    ref_f32 = jnp.maximum(x @ w1.T + b1, 0.0) @ w2.T + b2
    assert bool(jnp.allclose(out, ref_f32, atol=1e-1, rtol=1e-1))

    print("KERNEL_OK")
</pallas_src>

<mosaic_0001>
module attributes {stable_mosaic.version = 11 : i64} {
  func.func @_mlp_kernel(%arg0: i32, %arg1: memref<128x4xf32, #tpu.memory_space<vmem>>, %arg2: memref<4x128xbf16, #tpu.memory_space<vmem>>, %arg3: memref<1x128xf32, #tpu.memory_space<vmem>>, %arg4: memref<128x3xbf16, #tpu.memory_space<vmem>>, %arg5: memref<1x3xf32, #tpu.memory_space<vmem>>, %arg6: memref<128x3xf32, #tpu.memory_space<vmem>>) attributes {dimension_semantics = [#tpu.dimension_semantics<parallel>], iteration_bounds = array<i64: 2>, scalar_prefetch = 0 : i64, scratch_operands = 0 : i64, tpu.core_type = #tpu.core_type<tc>, window_params = [{transform_indices = @transform_0, window_bounds = array<i64: 128, 4>}, {pipeline_mode = #tpu.pipeline_mode<synchronous>, transform_indices = @transform_1, window_bounds = array<i64: 4, 128>}, {pipeline_mode = #tpu.pipeline_mode<synchronous>, transform_indices = @transform_2, window_bounds = array<i64: 1, 128>}, {pipeline_mode = #tpu.pipeline_mode<synchronous>, transform_indices = @transform_3, window_bounds = array<i64: 128, 3>}, {pipeline_mode = #tpu.pipeline_mode<synchronous>, transform_indices = @transform_4, window_bounds = array<i64: 1, 3>}, {transform_indices = @transform_5, window_bounds = array<i64: 128, 3>}]} {
    %c0 = arith.constant 0 : index
    %c0_0 = arith.constant 0 : index
    %0 = vector.load %arg1[%c0, %c0_0] : memref<128x4xf32, #tpu.memory_space<vmem>>, vector<128x4xf32>
    %1 = arith.truncf %0 : vector<128x4xf32> to vector<128x4xbf16>
    %c0_1 = arith.constant 0 : index
    %c0_2 = arith.constant 0 : index
    %2 = vector.load %arg2[%c0_1, %c0_2] : memref<4x128xbf16, #tpu.memory_space<vmem>>, vector<4x128xbf16>
    %cst = arith.constant dense<0.000000e+00> : vector<128x128xf32>
    %3 = tpu.matmul %1, %2, %cst {dimension_numbers = #tpu.dot_dimension_numbers<[1], [0], [0], [1], [0, 0, 1, 1], [], []>} : vector<128x4xbf16>, vector<4x128xbf16>, vector<128x128xf32> -> vector<128x128xf32>
    %c0_3 = arith.constant 0 : index
    %c0_4 = arith.constant 0 : index
    %4 = vector.load %arg3[%c0_3, %c0_4] : memref<1x128xf32, #tpu.memory_space<vmem>>, vector<1x128xf32>
    %5 = vector.broadcast %4 : vector<1x128xf32> to vector<128x128xf32>
    %6 = arith.addf %3, %5 : vector<128x128xf32>
    %cst_5 = arith.constant 0.000000e+00 : f32
    %7 = vector.broadcast %cst_5 : f32 to vector<128x128xf32>
    %8 = arith.maximumf %6, %7 : vector<128x128xf32>
    %9 = arith.truncf %8 : vector<128x128xf32> to vector<128x128xbf16>
    %c0_6 = arith.constant 0 : index
    %c0_7 = arith.constant 0 : index
    %10 = vector.load %arg4[%c0_6, %c0_7] : memref<128x3xbf16, #tpu.memory_space<vmem>>, vector<128x3xbf16>
    %cst_8 = arith.constant dense<0.000000e+00> : vector<128x3xf32>
    %11 = tpu.matmul %9, %10, %cst_8 {dimension_numbers = #tpu.dot_dimension_numbers<[1], [0], [0], [1], [0, 0, 1, 1], [], []>} : vector<128x128xbf16>, vector<128x3xbf16>, vector<128x3xf32> -> vector<128x3xf32>
    %c0_9 = arith.constant 0 : index
    %c0_10 = arith.constant 0 : index
    %12 = vector.load %arg5[%c0_9, %c0_10] : memref<1x3xf32, #tpu.memory_space<vmem>>, vector<1x3xf32>
    %13 = vector.broadcast %12 : vector<1x3xf32> to vector<128x3xf32>
    %14 = arith.addf %11, %13 : vector<128x3xf32>
    %c0_11 = arith.constant 0 : index
    %c0_12 = arith.constant 0 : index
    %15 = vector.load %arg6[%c0_11, %c0_12] : memref<128x3xf32, #tpu.memory_space<vmem>>, vector<128x3xf32>
    tpu.vector_store %arg6[%c0_11, %c0_12], %14 {strides = array<i32>} : memref<128x3xf32, #tpu.memory_space<vmem>>, vector<128x3xf32>,
    return
  }
  func.func @transform_0(%arg0: i32) -> (i32, i32) {
    %c0_i32 = arith.constant 0 : i32
    %c0_i32_0 = arith.constant 0 : i32
    return %arg0, %c0_i32 : i32, i32
  }
  func.func @transform_1(%arg0: i32) -> (i32, i32) {
    %c0_i32 = arith.constant 0 : i32
    %c0_i32_0 = arith.constant 0 : i32
    %c0_i32_1 = arith.constant 0 : i32
    return %c0_i32, %c0_i32_0 : i32, i32
  }
  func.func @transform_2(%arg0: i32) -> (i32, i32) {
    %c0_i32 = arith.constant 0 : i32
    %c0_i32_0 = arith.constant 0 : i32
    %c0_i32_1 = arith.constant 0 : i32
    return %c0_i32, %c0_i32_0 : i32, i32
  }
  func.func @transform_3(%arg0: i32) -> (i32, i32) {
    %c0_i32 = arith.constant 0 : i32
    %c0_i32_0 = arith.constant 0 : i32
    %c0_i32_1 = arith.constant 0 : i32
    return %c0_i32, %c0_i32_0 : i32, i32
  }
  func.func @transform_4(%arg0: i32) -> (i32, i32) {
    %c0_i32 = arith.constant 0 : i32
    %c0_i32_0 = arith.constant 0 : i32
    %c0_i32_1 = arith.constant 0 : i32
    return %c0_i32, %c0_i32_0 : i32, i32
  }
  func.func @transform_5(%arg0: i32) -> (i32, i32) {
    %c0_i32 = arith.constant 0 : i32
    %c0_i32_0 = arith.constant 0 : i32
    return %arg0, %c0_i32 : i32, i32
  }
}

</mosaic_0001>

<llo_original>
// kernel: tpu_custom_call.1
$region0: #{tpu_custom_call.1}
  #allocation0 [shape = 'u32[]', space=smem, size = 0x4, offset = 0x4, fixed_abs, tag = 'smem constant byte address 0x4 - core index']
  #allocation1 [shape = 'u32[144,128]{1,0:T(1,128)}', space=vmem, size = 0x12000, scoped, tag = 'internal scratch']
  %s0 = inlined_call_operand.vmem [shape: f32[256,4], index: 0, kind: input, shape index: {}]
  %s1 = inlined_call_operand.vmem [shape: bf16[4,128], index: 1, kind: input, shape index: {}]
  %s2 = inlined_call_operand.vmem [shape: f32[1,128], index: 2, kind: input, shape index: {}]
  %s3 = inlined_call_operand.vmem [shape: bf16[128,3], index: 3, kind: input, shape index: {}]
  %s4 = inlined_call_operand.vmem [shape: f32[1,3], index: 4, kind: input, shape index: {}]
  %s5 = inlined_call_operand.vmem [shape: f32[256,3], index: 5, kind: output, shape index: {}]
  %s6 = sld [smem:[#allocation0]]
  $region53: #{tpu_custom_call.1} parent=0
    _
  %s8 = ssub.s32 1, %s6
  %s9 = scalar_select 0, %s8, %s6
  loop: start=0, step=1, limit=4
  $region2: #{tpu_custom_call.1} parent=0 // loop_pre_header
    _
  $region3: #{tpu_custom_call.1} parent=0 // loop_header
    %s11 = sphi 0, %s15
    %p12 = scmp.ge.s32.totalorder %s11, 4
    %s21 = sphi 0, %s23
    %s24 = sphi 0, %s21
    %s25 = sphi 0, %s24
    %s41 = sphi 0, %s25
    %s45 = sphi 0, %s45
    %s47 = sphi 0, %s45
    %s48 = sphi 0, %s47
    %s62 = sphi 0, %s48
    %s66 = sphi 0, %s66
    %s68 = sphi 0, %s66
    %s69 = sphi 0, %s68
    %s83 = sphi 0, %s69
    %s87 = sphi 0, %s87
    %s89 = sphi 0, %s87
    %s90 = sphi 0, %s89
    %s104 = sphi 0, %s90
    %s108 = sphi 0, %s108
    %s110 = sphi 0, %s108
    %s111 = sphi 0, %s110
    %s125 = sphi 0, %s111
    %s131 = sphi 0, %s133
    %s134 = sphi 0, %s131
    %s135 = sphi 0, %s134
    %s151 = sphi 0, %s135
  $region4: #{tpu_custom_call.1} parent=0 // loop_header_branch
    %14 = sbr.rel (%p12) target = $region8
  $region5: #{tpu_custom_call.1} parent=0 // loop_body
    %s16 = ssub.s32 %s11, 1
    %s17 = ssub.s32 %s11, 2
    %s18 = sadd.s32 %s11, 1
    %s19 = ssub.s32 %s11, %s18
    %p20 = scmp.eq.s32.totalorder %s19, 0
    %s22 = sadd.s32 %s21, 1
    %s23 = scalar_select %p20, %s21, %s22
    %p26 = pneg %p20
    %p27 = scmp.eq.s32.totalorder %s11, 1
    %p28 = por %p26, %p27
    %p29 = scmp.ne.s32.totalorder %s21, %s24
    %p30 = scmp.eq.s32.totalorder %s11, 0
    %p31 = por %p29, %p30
    %p32 = scmp.ne.s32.totalorder %s21, %s24
    %p33 = scmp.eq.s32.totalorder %s16, 1
    %p34 = por %p32, %p33
    %p35 = scmp.ne.s32.totalorder %s24, %s25
    %p36 = scmp.eq.s32.totalorder %s16, 0
    %p37 = por %p35, %p36
    %p38 = scmp.ne.s32.totalorder %s24, %s25
    %p39 = scmp.eq.s32.totalorder %s17, 1
    %p40 = por %p38, %p39
    %p42 = scmp.ne.s32.totalorder %s25, %s41
    %p43 = scmp.eq.s32.totalorder %s17, 0
    %p44 = por %p42, %p43
    %s46 = sadd.s32 %s45, 1
    %p49 = scmp.eq.s32.totalorder %s11, 1
    %p50 = scmp.ne.s32.totalorder %s45, %s47
    %p51 = scmp.eq.s32.totalorder %s11, 0
    %p52 = por %p50, %p51
    %p53 = scmp.ne.s32.totalorder %s45, %s47
    %p54 = scmp.eq.s32.totalorder %s16, 1
    %p55 = por %p53, %p54
    %p56 = scmp.ne.s32.totalorder %s47, %s48
    %p57 = scmp.eq.s32.totalorder %s16, 0
    %p58 = por %p56, %p57
    %p59 = scmp.ne.s32.totalorder %s47, %s48
    %p60 = scmp.eq.s32.totalorder %s17, 1
    %p61 = por %p59, %p60
    %p63 = scmp.ne.s32.totalorder %s48, %s62
    %p64 = scmp.eq.s32.totalorder %s17, 0
    %p65 = por %p63, %p64
    %s67 = sadd.s32 %s66, 1
    %p70 = scmp.eq.s32.totalorder %s11, 1
    %p71 = scmp.ne.s32.totalorder %s66, %s68
    %p72 = scmp.eq.s32.totalorder %s11, 0
    %p73 = por %p71, %p72
    %p74 = scmp.ne.s32.totalorder %s66, %s68
    %p75 = scmp.eq.s32.totalorder %s16, 1
    %p76 = por %p74, %p75
    %p77 = scmp.ne.s32.totalorder %s68, %s69
    %p78 = scmp.eq.s32.totalorder %s16, 0
    %p79 = por %p77, %p78
    %p80 = scmp.ne.s32.totalorder %s68, %s69
    %p81 = scmp.eq.s32.totalorder %s17, 1
    %p82 = por %p80, %p81
    %p84 = scmp.ne.s32.totalorder %s69, %s83
    %p85 = scmp.eq.s32.totalorder %s17, 0
    %p86 = por %p84, %p85
    %s88 = sadd.s32 %s87, 1
    %p91 = scmp.eq.s32.totalorder %s11, 1
    %p92 = scmp.ne.s32.totalorder %s87, %s89
    %p93 = scmp.eq.s32.totalorder %s11, 0
    %p94 = por %p92, %p93
    %p95 = scmp.ne.s32.totalorder %s87, %s89
    %p96 = scmp.eq.s32.totalorder %s16, 1
    %p97 = por %p95, %p96
    %p98 = scmp.ne.s32.totalorder %s89, %s90
    %p99 = scmp.eq.s32.totalorder %s16, 0
    %p100 = por %p98, %p99
    %p101 = scmp.ne.s32.totalorder %s89, %s90
    %p102 = scmp.eq.s32.totalorder %s17, 1
    %p103 = por %p101, %p102
    %p105 = scmp.ne.s32.totalorder %s90, %s104
    %p106 = scmp.eq.s32.totalorder %s17, 0
    %p107 = por %p105, %p106
    %s109 = sadd.s32 %s108, 1
    %p112 = scmp.eq.s32.totalorder %s11, 1
    %p113 = scmp.ne.s32.totalorder %s108, %s110
    %p114 = scmp.eq.s32.totalorder %s11, 0
    %p115 = por %p113, %p114
    %p116 = scmp.ne.s32.totalorder %s108, %s110
    %p117 = scmp.eq.s32.totalorder %s16, 1
    %p118 = por %p116, %p117
    %p119 = scmp.ne.s32.totalorder %s110, %s111
    %p120 = scmp.eq.s32.totalorder %s16, 0
    %p121 = por %p119, %p120
    %p122 = scmp.ne.s32.totalorder %s110, %s111
    %p123 = scmp.eq.s32.totalorder %s17, 1
    %p124 = por %p122, %p123
    %p126 = scmp.ne.s32.totalorder %s111, %s125
    %p127 = scmp.eq.s32.totalorder %s17, 0
    %p128 = por %p126, %p127
    %s129 = ssub.s32 %s11, %s18
    %p130 = scmp.eq.s32.totalorder %s129, 0
    %s132 = sadd.s32 %s131, 1
    %s133 = scalar_select %p130, %s131, %s132
    %p136 = pneg %p130
    %p137 = scmp.eq.s32.totalorder %s11, 1
    %p138 = por %p136, %p137
    %p139 = scmp.ne.s32.totalorder %s131, %s134
    %p140 = scmp.eq.s32.totalorder %s11, 0
    %p141 = por %p139, %p140
    %p142 = scmp.ne.s32.totalorder %s131, %s134
    %p143 = scmp.eq.s32.totalorder %s16, 1
    %p144 = por %p142, %p143
    %p145 = scmp.ne.s32.totalorder %s134, %s135
    %p146 = scmp.eq.s32.totalorder %s16, 0
    %p147 = por %p145, %p146
    %p148 = scmp.ne.s32.totalorder %s134, %s135
    %p149 = scmp.eq.s32.totalorder %s17, 1
    %p150 = por %p148, %p149
    %p152 = scmp.ne.s32.totalorder %s135, %s151
    %p153 = scmp.eq.s32.totalorder %s17, 0
    %p154 = por %p152, %p153
    %p155 = scmp.le.s32.totalorder 1, %s11
    %p156 = scmp.lt.s32.totalorder %s11, 3
    %p157 = pnand %p155, %p156
    %p158 = pneg %p157
    // Predicated region
    $region9: #{tpu_custom_call.1} parent=5 // pred_check
      _
    $region10: #{tpu_custom_call.1} parent=5 // pred_check_branch
      %160 = sbr.rel (%p157) target = $region12
    $region11: #{tpu_custom_call.1} parent=5 // pred_region
      %s161 = ssub.s32 %s11, 1
      // Predicated region
      $region13: #{tpu_custom_call.1} parent=11 // pred_check
        %p162 = pneg %p58
      $region14: #{tpu_custom_call.1} parent=11 // pred_check_branch
        %164 = sbr.rel (%p162) target = $region16
      $region15: #{tpu_custom_call.1} parent=11 // pred_region
        _
      $region16: #{tpu_custom_call.1} parent=11 // pred_fallthru
        _
      // Predicated region
      $region17: #{tpu_custom_call.1} parent=11 // pred_check
        %p165 = pneg %p79
      $region18: #{tpu_custom_call.1} parent=11 // pred_check_branch
        %167 = sbr.rel (%p165) target = $region20
      $region19: #{tpu_custom_call.1} parent=11 // pred_region
        _
      $region20: #{tpu_custom_call.1} parent=11 // pred_fallthru
        _
      // Predicated region
      $region21: #{tpu_custom_call.1} parent=11 // pred_check
        %p168 = pneg %p100
      $region22: #{tpu_custom_call.1} parent=11 // pred_check_branch
        %170 = sbr.rel (%p168) target = $region24
      $region23: #{tpu_custom_call.1} parent=11 // pred_region
        _
      $region24: #{tpu_custom_call.1} parent=11 // pred_fallthru
        _
      // Predicated region
      $region25: #{tpu_custom_call.1} parent=11 // pred_check
        %p171 = pneg %p121
      $region26: #{tpu_custom_call.1} parent=11 // pred_check_branch
        %173 = sbr.rel (%p171) target = $region28
      $region27: #{tpu_custom_call.1} parent=11 // pred_region
        _
      $region28: #{tpu_custom_call.1} parent=11 // pred_fallthru
        _
    $region12: #{tpu_custom_call.1} parent=5 // pred_fallthru
      _
    %p174 = scmp.lt.s32.totalorder %s11, 2
    // Predicated region
    $region29: #{tpu_custom_call.1} parent=5 // pred_check
      %p175 = pneg %p174
    $region30: #{tpu_custom_call.1} parent=5 // pred_check_branch
      %177 = sbr.rel (%p175) target = $region32
    $region31: #{tpu_custom_call.1} parent=5 // pred_region
      // Predicated region
      $region33: #{tpu_custom_call.1} parent=31 // pred_check
        %p178 = pneg %p31
      $region34: #{tpu_custom_call.1} parent=31 // pred_check_branch
        %180 = sbr.rel (%p178) target = $region36
      $region35: #{tpu_custom_call.1} parent=31 // pred_region
        %s181 = smul.u32 16, %s11
        %p182 = scmp.lt.s32.totalorder %s181, 31
        %s183 = scalar_select %p182, %s181, 31
        %s184 = smul.addr %s183, 8
        %s185 = scalar_lea.vmem %s0, %s184
        %s186 = smul.u32 16, %s11
      $region36: #{tpu_custom_call.1} parent=31 // pred_fallthru
        _
    $region32: #{tpu_custom_call.1} parent=5 // pred_fallthru
      _
    %p187 = scmp.le.s32.totalorder 1, %s11
    %p188 = scmp.lt.s32.totalorder %s11, 3
    %p189 = pnand %p187, %p188
    %p190 = pneg %p189
    // Predicated region
    $region37: #{tpu_custom_call.1} parent=5 // pred_check
      _
    $region38: #{tpu_custom_call.1} parent=5 // pred_check_branch
      %192 = sbr.rel (%p189) target = $region40
    $region39: #{tpu_custom_call.1} parent=5 // pred_region
      %s193 = ssub.s32 %s11, 1
      %s194 = smul.u32 16, %s16
      %p195 = scmp.lt.s32.totalorder %s194, 31
      %s196 = scalar_select %p195, %s194, 31
      %s197 = smul.addr %s196, 8
      %s198 = scalar_lea.vmem %s0, %s197
      %p199 = pneg %p37
      %p200 = pneg %p34
      %p201 = pneg %p58
      %p202 = pneg %p55
      %p203 = pneg %p79
      %p204 = pneg %p76
      %p205 = pneg %p100
      %p206 = pneg %p97
      %p207 = pneg %p121
      %p208 = pneg %p118
      %p209 = pneg %p147
      %p210 = pneg %p144
      %s211 = smul.u32 16, %s16
      %p212 = scmp.lt.s32.totalorder %s211, 31
      %s213 = scalar_select %p212, %s211, 31
      %s214 = smul.addr %s213, 8
      %s215 = scalar_lea.vmem %s5, %s214
      %s216 = smul.u32 16, %s16
      %p217 = scmp.lt.s32.totalorder %s216, 31
      %s218 = scalar_select %p217, %s216, 31
      %s219 = smul.addr %s218, 8
      %s220 = scalar_lea.vmem %s0, %s219
      %s221 = smul.u32 16, %s16
      %s222 = smul.u32 16, %s16
      %p223 = scmp.lt.s32.totalorder %s222, 31
      %s224 = scalar_select %p223, %s222, 31
      %s225 = smul.addr %s224, 8
      %s226 = scalar_lea.vmem %s5, %s225
      %s227 = smul.u32 16, %s16
      %v229 = vld [vmem:[%s220] sm:$0xff]
      %v230 = vld [vmem:[%s220 + $0x8] sm:$0xff]
      %v231 = vld [vmem:[%s220 + $0x10] sm:$0xff]
      %v232 = vld [vmem:[%s220 + $0x18] sm:$0xff]
      %v233 = vld [vmem:[%s220 + $0x20] sm:$0xff]
      %v234 = vld [vmem:[%s220 + $0x28] sm:$0xff]
      %v235 = vld [vmem:[%s220 + $0x30] sm:$0xff]
      %v236 = vld [vmem:[%s220 + $0x38] sm:$0xff]
      %v237 = vld [vmem:[%s220 + $0x40] sm:$0xff]
      %v238 = vld [vmem:[%s220 + $0x48] sm:$0xff]
      %v239 = vld [vmem:[%s220 + $0x50] sm:$0xff]
      %v240 = vld [vmem:[%s220 + $0x58] sm:$0xff]
      %v241 = vld [vmem:[%s220 + $0x60] sm:$0xff]
      %v242 = vld [vmem:[%s220 + $0x68] sm:$0xff]
      %v243 = vld [vmem:[%s220 + $0x70] sm:$0xff]
      %v244 = vld [vmem:[%s220 + $0x78] sm:$0xff]
      %v245 = vpack.c.bf16 %v230, %v229
      %v246 = vpack.c.bf16 %v232, %v231
      %v247 = vpack.c.bf16 %v234, %v233
      %v248 = vpack.c.bf16 %v236, %v235
      %v249 = vpack.c.bf16 %v238, %v237
      %v250 = vpack.c.bf16 %v240, %v239
      %v251 = vpack.c.bf16 %v242, %v241
      %v252 = vpack.c.bf16 %v244, %v243
      %v253 = vld [vmem:[%s1] sm:$0x3]
      %v254 = vld [vmem:[%s2] sm:$0x1]
      %v256 = vlaneseq
      %v257 = vshrl.u32 %v256, 7
      %v258 = vsub.s32 0, %v257
      %v259 = vrot.slane %v254, %v258
      %vm261 = vcmask 31744
      %v263 = vsel %vm261, %v245, 0
      %v266 = vsel %vm261, %v246, 0
      %v269 = vsel %vm261, %v247, 0
      %v272 = vsel %vm261, %v248, 0
      %v275 = vsel %vm261, %v249, 0
      %v278 = vsel %vm261, %v250, 0
      %v281 = vsel %vm261, %v251, 0
      %v284 = vsel %vm261, %v252, 0
      %vm286 = vcmask 1041408
      %v288 = vsel %vm286, %v253, 0
      %290 = vmatprep.subr.bf16.mxu0 0
      %291 = vmatpush1.bf16.msra.mxu0 %v288
      %292 = vmatprep.subr.bf16.mxu0 0
      %293 = vmatpush1.bf16.msra.mxu0 0
      %294 = vmatprep.subr.bf16.mxu0 0
      %295 = vmatpush1.bf16.msra.mxu0 0
      %296 = vmatprep.subr.bf16.mxu0 0
      %297 = vmatpush1.bf16.msra.mxu0 0
      %298 = vmatprep.subr.bf16.mxu0 0
      %299 = vmatpush1.bf16.msra.mxu0 0
      %300 = vmatprep.subr.bf16.mxu0 0
      %301 = vmatpush1.bf16.msra.mxu0 0
      %302 = vmatprep.subr.bf16.mxu0 0
      %303 = vmatpush1.bf16.msra.mxu0 0
      %304 = vmatprep.subr.bf16.mxu0 0
      %305 = vmatpush1.bf16.msra.mxu0 0
      %306 = vmatprep.subr.bf16.mxu0 0
      %307 = vmatpush1.bf16.msra.mxu0 0
      %308 = vmatprep.subr.bf16.mxu0 0
      %309 = vmatpush1.bf16.msra.mxu0 0
      %310 = vmatprep.subr.bf16.mxu0 0
      %311 = vmatpush1.bf16.msra.mxu0 0
      %312 = vmatprep.subr.bf16.mxu0 0
      %313 = vmatpush1.bf16.msra.mxu0 0
      %314 = vmatprep.subr.bf16.mxu0 0
      %315 = vmatpush1.bf16.msra.mxu0 0
      %316 = vmatprep.subr.bf16.mxu0 0
      %317 = vmatpush1.bf16.msra.mxu0 0
      %318 = vmatprep.subr.bf16.mxu0 0
      %319 = vmatpush1.bf16.msra.mxu0 0
      %320 = vmatprep.subr.bf16.mxu0 0
      %321 = vmatpush1.bf16.msra.mxu0 0
      %322 = vmatprep.mubr.bf16.mxu0 0
      %323 = vmatmul.mubr.bf16.gmra.mrb[0].mxu0 %v263
      %v324 = vpop.f32.mrb[0].mxu0
      %v325 = vadd.f32 %v259, %v324
      %v326 = vpop.f32.mrb[0].mxu0
      %v327 = vpop.f32.mrb[0].mxu0
      %v328 = vadd.f32 %v259, %v327
      %v329 = vpop.f32.mrb[0].mxu0
      %330 = vmatprep.mubr.bf16.mxu0 0
      %331 = vmatmul.mubr.bf16.gmra.mrb[0].mxu0 %v266
      %v332 = vpop.f32.mrb[0].mxu0
      %v333 = vadd.f32 %v259, %v332
      %v334 = vpop.f32.mrb[0].mxu0
      %v335 = vpop.f32.mrb[0].mxu0
      %v336 = vadd.f32 %v259, %v335
      %v337 = vpop.f32.mrb[0].mxu0
      %338 = vmatprep.mubr.bf16.mxu0 0
      %339 = vmatmul.mubr.bf16.gmra.mrb[0].mxu0 %v269
      %v340 = vpop.f32.mrb[0].mxu0
      %v341 = vadd.f32 %v259, %v340
      %v342 = vpop.f32.mrb[0].mxu0
      %v343 = vpop.f32.mrb[0].mxu0
      %v344 = vadd.f32 %v259, %v343
      %v345 = vpop.f32.mrb[0].mxu0
      %346 = vmatprep.mubr.bf16.mxu0 0
      %347 = vmatmul.mubr.bf16.gmra.mrb[0].mxu0 %v272
      %v348 = vpop.f32.mrb[0].mxu0
      %v349 = vadd.f32 %v259, %v348
      %v350 = vpop.f32.mrb[0].mxu0
      %v351 = vpop.f32.mrb[0].mxu0
      %v352 = vadd.f32 %v259, %v351
      %v353 = vpop.f32.mrb[0].mxu0
      %354 = vmatprep.mubr.bf16.mxu0 0
      %355 = vmatmul.mubr.bf16.gmra.mrb[0].mxu0 %v275
      %v356 = vpop.f32.mrb[0].mxu0
      %v357 = vadd.f32 %v259, %v356
      %v358 = vpop.f32.mrb[0].mxu0
      %v359 = vpop.f32.mrb[0].mxu0
      %v360 = vadd.f32 %v259, %v359
      %v361 = vpop.f32.mrb[0].mxu0
      %362 = vmatprep.mubr.bf16.mxu0 0
      %363 = vmatmul.mubr.bf16.gmra.mrb[0].mxu0 %v278
      %v364 = vpop.f32.mrb[0].mxu0
      %v365 = vadd.f32 %v259, %v364
      %v366 = vpop.f32.mrb[0].mxu0
      %v367 = vpop.f32.mrb[0].mxu0
      %v368 = vadd.f32 %v259, %v367
      %v369 = vpop.f32.mrb[0].mxu0
      %370 = vmatprep.mubr.bf16.mxu0 0
      %371 = vmatmul.mubr.bf16.gmra.mrb[0].mxu0 %v281
      %v372 = vpop.f32.mrb[0].mxu0
      %v373 = vadd.f32 %v259, %v372
      %v374 = vpop.f32.mrb[0].mxu0
      %v375 = vpop.f32.mrb[0].mxu0
      %v376 = vadd.f32 %v259, %v375
      %v377 = vpop.f32.mrb[0].mxu0
      %378 = vmatprep.mubr.bf16.mxu0 0
      %379 = vmatmul.mubr.bf16.gmra.mrb[0].mxu0 %v284
      %v380 = vpop.f32.mrb[0].mxu0
      %v381 = vadd.f32 %v259, %v380
      %v382 = vpop.f32.mrb[0].mxu0
      %v383 = vpop.f32.mrb[0].mxu0
      %v384 = vadd.f32 %v259, %v383
      %v385 = vpop.f32.mrb[0].mxu0
      %386 = vdwg.mxu0
      %v387 = vmax.f32 %v325, 0.0
      %v388 = vmax.f32 %v328, 0.0
      %v389 = vmax.f32 %v333, 0.0
      %v390 = vmax.f32 %v336, 0.0
      %v391 = vmax.f32 %v341, 0.0
      %v392 = vmax.f32 %v344, 0.0
      %v393 = vmax.f32 %v349, 0.0
      %v394 = vmax.f32 %v352, 0.0
      %v395 = vmax.f32 %v357, 0.0
      %v396 = vmax.f32 %v360, 0.0
      %v397 = vmax.f32 %v365, 0.0
      %v398 = vmax.f32 %v368, 0.0
      %v399 = vmax.f32 %v373, 0.0
      %v400 = vmax.f32 %v376, 0.0
      %v401 = vmax.f32 %v381, 0.0
      %v402 = vmax.f32 %v384, 0.0
      %v403 = vpack.c.bf16 %v388, %v387
      %v404 = vpack.c.bf16 %v390, %v389
      %v405 = vpack.c.bf16 %v392, %v391
      %v406 = vpack.c.bf16 %v394, %v393
      %v407 = vpack.c.bf16 %v396, %v395
      %v408 = vpack.c.bf16 %v398, %v397
      %v409 = vpack.c.bf16 %v400, %v399
      %v410 = vpack.c.bf16 %v402, %v401
      %v411 = vld [vmem:[%s3] sm:$0xf]
      %v412 = vld [vmem:[%s3 + $0x4] sm:$0xf]
      %v413 = vld [vmem:[%s3 + $0x8] sm:$0xf]
      %v414 = vld [vmem:[%s3 + $0xc] sm:$0xf]
      %v415 = vld [vmem:[%s3 + $0x10] sm:$0xf]
      %v416 = vld [vmem:[%s3 + $0x14] sm:$0xf]
      %v417 = vld [vmem:[%s3 + $0x18] sm:$0xf]
      %v418 = vld [vmem:[%s3 + $0x1c] sm:$0xf]
      %v419 = vld [vmem:[%s3 + $0x20] sm:$0xf]
      %v420 = vld [vmem:[%s3 + $0x24] sm:$0xf]
      %v421 = vld [vmem:[%s3 + $0x28] sm:$0xf]
      %v422 = vld [vmem:[%s3 + $0x2c] sm:$0xf]
      %v423 = vld [vmem:[%s3 + $0x30] sm:$0xf]
      %v424 = vld [vmem:[%s3 + $0x34] sm:$0xf]
      %v425 = vld [vmem:[%s3 + $0x38] sm:$0xf]
      %v426 = vld [vmem:[%s3 + $0x3c] sm:$0xf]
      %v427 = vld [vmem:[%s4] sm:$0x1]
      %v429 = vlaneseq
      %v430 = vshrl.u32 %v429, 7
      %v431 = vsub.s32 0, %v430
      %v432 = vrot.slane %v427, %v431
      %v450 = vunpack.c.l.b16 %v411
      %v451 = vunpack.c.l.b16 %v412
      %v452 = vunpack.c.l.b16 %v413
      %v453 = vunpack.c.l.b16 %v414
      %v454 = vunpack.c.l.b16 %v415
      %v455 = vunpack.c.l.b16 %v416
      %v456 = vunpack.c.l.b16 %v417
      %v457 = vunpack.c.l.b16 %v418
      %v458 = vunpack.c.l.b16 %v419
      %v459 = vunpack.c.l.b16 %v420
      %v460 = vunpack.c.l.b16 %v421
      %v461 = vunpack.c.l.b16 %v422
      %v462 = vunpack.c.l.b16 %v423
      %v463 = vunpack.c.l.b16 %v424
      %v464 = vunpack.c.l.b16 %v425
      %v465 = vunpack.c.l.b16 %v426
      %v466 = vpack.c.b16 %v451, %v450
      %v467 = vpack.c.b16 %v453, %v452
      %v468 = vpack.c.b16 %v455, %v454
      %v469 = vpack.c.b16 %v457, %v456
      %v470 = vpack.c.b16 %v459, %v458
      %v471 = vpack.c.b16 %v461, %v460
      %v472 = vpack.c.b16 %v463, %v462
      %v473 = vpack.c.b16 %v465, %v464
      %482 = vmatprep.subr.bf16.mxu0 0
      %483 = vmatpush1.bf16.msra.mxu0 %v466
      %484 = vmatprep.subr.bf16.mxu0 0
      %485 = vmatpush1.bf16.msra.mxu0 %v467
      %486 = vmatprep.subr.bf16.mxu0 0
      %487 = vmatpush1.bf16.msra.mxu0 %v468
      %488 = vmatprep.subr.bf16.mxu0 0
      %489 = vmatpush1.bf16.msra.mxu0 %v469
      %490 = vmatprep.subr.bf16.mxu0 0
      %491 = vmatpush1.bf16.msra.mxu0 %v470
      %492 = vmatprep.subr.bf16.mxu0 0
      %493 = vmatpush1.bf16.msra.mxu0 %v471
      %494 = vmatprep.subr.bf16.mxu0 0
      %495 = vmatpush1.bf16.msra.mxu0 %v472
      %496 = vmatprep.subr.bf16.mxu0 0
      %497 = vmatpush1.bf16.msra.mxu0 %v473
      %498 = vmatprep.subr.bf16.mxu0 0
      %499 = vmatpush1.bf16.msra.mxu0 0
      %500 = vmatprep.subr.bf16.mxu0 0
      %501 = vmatpush1.bf16.msra.mxu0 0
      %502 = vmatprep.subr.bf16.mxu0 0
      %503 = vmatpush1.bf16.msra.mxu0 0
      %504 = vmatprep.subr.bf16.mxu0 0
      %505 = vmatpush1.bf16.msra.mxu0 0
      %506 = vmatprep.subr.bf16.mxu0 0
      %507 = vmatpush1.bf16.msra.mxu0 0
      %508 = vmatprep.subr.bf16.mxu0 0
      %509 = vmatpush1.bf16.msra.mxu0 0
      %510 = vmatprep.subr.bf16.mxu0 0
      %511 = vmatpush1.bf16.msra.mxu0 0
      %512 = vmatprep.subr.bf16.mxu0 0
      %513 = vmatpush1.bf16.msra.mxu0 0
      %514 = vmatprep.mubr.bf16.mxu0 0
      %515 = vmatmul.mubr.bf16.gmra.mrb[0].mxu0 %v403
      %v516 = vpop.f32.mrb[0].mxu0
      %v517 = vadd.f32 %v432, %v516
      %v518 = vpop.f32.mrb[0].mxu0
      %v519 = vpop.f32.mrb[0].mxu0
      %v520 = vadd.f32 %v432, %v519
      %v521 = vpop.f32.mrb[0].mxu0
      %522 = vmatprep.mubr.bf16.mxu0 0
      %523 = vmatmul.mubr.bf16.gmra.mrb[0].mxu0 %v404
      %v524 = vpop.f32.mrb[0].mxu0
      %v525 = vadd.f32 %v432, %v524
      %v526 = vpop.f32.mrb[0].mxu0
      %v527 = vpop.f32.mrb[0].mxu0
      %v528 = vadd.f32 %v432, %v527
      %v529 = vpop.f32.mrb[0].mxu0
      %530 = vmatprep.mubr.bf16.mxu0 0
      %531 = vmatmul.mubr.bf16.gmra.mrb[0].mxu0 %v405
      %v532 = vpop.f32.mrb[0].mxu0
      %v533 = vadd.f32 %v432, %v532
      %v534 = vpop.f32.mrb[0].mxu0
      %v535 = vpop.f32.mrb[0].mxu0
      %v536 = vadd.f32 %v432, %v535
      %v537 = vpop.f32.mrb[0].mxu0
      %538 = vmatprep.mubr.bf16.mxu0 0
      %539 = vmatmul.mubr.bf16.gmra.mrb[0].mxu0 %v406
      %v540 = vpop.f32.mrb[0].mxu0
      %v541 = vadd.f32 %v432, %v540
      %v542 = vpop.f32.mrb[0].mxu0
      %v543 = vpop.f32.mrb[0].mxu0
      %v544 = vadd.f32 %v432, %v543
      %v545 = vpop.f32.mrb[0].mxu0
      %546 = vmatprep.mubr.bf16.mxu0 0
      %547 = vmatmul.mubr.bf16.gmra.mrb[0].mxu0 %v407
      %v548 = vpop.f32.mrb[0].mxu0
      %v549 = vadd.f32 %v432, %v548
      %v550 = vpop.f32.mrb[0].mxu0
      %v551 = vpop.f32.mrb[0].mxu0
      %v552 = vadd.f32 %v432, %v551
      %v553 = vpop.f32.mrb[0].mxu0
      %554 = vmatprep.mubr.bf16.mxu0 0
      %555 = vmatmul.mubr.bf16.gmra.mrb[0].mxu0 %v408
      %v556 = vpop.f32.mrb[0].mxu0
      %v557 = vadd.f32 %v432, %v556
      %v558 = vpop.f32.mrb[0].mxu0
      %v559 = vpop.f32.mrb[0].mxu0
      %v560 = vadd.f32 %v432, %v559
      %v561 = vpop.f32.mrb[0].mxu0
      %562 = vmatprep.mubr.bf16.mxu0 0
      %563 = vmatmul.mubr.bf16.gmra.mrb[0].mxu0 %v409
      %v564 = vpop.f32.mrb[0].mxu0
      %v565 = vadd.f32 %v432, %v564
      %v566 = vpop.f32.mrb[0].mxu0
      %v567 = vpop.f32.mrb[0].mxu0
      %v568 = vadd.f32 %v432, %v567
      %v569 = vpop.f32.mrb[0].mxu0
      %570 = vmatprep.mubr.bf16.mxu0 0
      %571 = vmatmul.mubr.bf16.gmra.mrb[0].mxu0 %v410
      %v572 = vpop.f32.mrb[0].mxu0
      %v573 = vadd.f32 %v432, %v572
      %v574 = vpop.f32.mrb[0].mxu0
      %v575 = vpop.f32.mrb[0].mxu0
      %v576 = vadd.f32 %v432, %v575
      %v577 = vpop.f32.mrb[0].mxu0
      %578 = vdwg.mxu0
      %vm579 = vcmask 23552
      %580 = vst.msk [vmem:[%s226] sm:$0xff] %vm579, %v517
      %581 = vst.msk [vmem:[%s226 + $0x8] sm:$0xff] %vm579, %v520
      %582 = vst.msk [vmem:[%s226 + $0x10] sm:$0xff] %vm579, %v525
      %583 = vst.msk [vmem:[%s226 + $0x18] sm:$0xff] %vm579, %v528
      %584 = vst.msk [vmem:[%s226 + $0x20] sm:$0xff] %vm579, %v533
      %585 = vst.msk [vmem:[%s226 + $0x28] sm:$0xff] %vm579, %v536
      %586 = vst.msk [vmem:[%s226 + $0x30] sm:$0xff] %vm579, %v541
      %587 = vst.msk [vmem:[%s226 + $0x38] sm:$0xff] %vm579, %v544
      %588 = vst.msk [vmem:[%s226 + $0x40] sm:$0xff] %vm579, %v549
      %589 = vst.msk [vmem:[%s226 + $0x48] sm:$0xff] %vm579, %v552
      %590 = vst.msk [vmem:[%s226 + $0x50] sm:$0xff] %vm579, %v557
      %591 = vst.msk [vmem:[%s226 + $0x58] sm:$0xff] %vm579, %v560
      %592 = vst.msk [vmem:[%s226 + $0x60] sm:$0xff] %vm579, %v565
      %593 = vst.msk [vmem:[%s226 + $0x68] sm:$0xff] %vm579, %v568
      %594 = vst.msk [vmem:[%s226 + $0x70] sm:$0xff] %vm579, %v573
      %595 = vst.msk [vmem:[%s226 + $0x78] sm:$0xff] %vm579, %v576
      %s596 = smul.u32 16, %s16
      %p597 = scmp.lt.s32.totalorder %s596, 31
      %s598 = scalar_select %p597, %s596, 31
      %s599 = smul.addr %s598, 8
      %s600 = scalar_lea.vmem %s5, %s599
      // Predicated region
      $region41: #{tpu_custom_call.1} parent=39 // pred_check
        %p601 = pneg %p144
      $region42: #{tpu_custom_call.1} parent=39 // pred_check_branch
        %603 = sbr.rel (%p601) target = $region44
      $region43: #{tpu_custom_call.1} parent=39 // pred_region
        %s604 = smul.u32 16, %s16
      $region44: #{tpu_custom_call.1} parent=39 // pred_fallthru
        _
    $region40: #{tpu_custom_call.1} parent=5 // pred_fallthru
      _
    %p605 = scmp.le.s32.totalorder 2, %s11
    // Predicated region
    $region45: #{tpu_custom_call.1} parent=5 // pred_check
      %p606 = pneg %p605
    $region46: #{tpu_custom_call.1} parent=5 // pred_check_branch
      %608 = sbr.rel (%p606) target = $region48
    $region47: #{tpu_custom_call.1} parent=5 // pred_region
      %s609 = ssub.s32 %s11, 2
      // Predicated region
      $region49: #{tpu_custom_call.1} parent=47 // pred_check
        %p610 = pneg %p150
      $region50: #{tpu_custom_call.1} parent=47 // pred_check_branch
        %612 = sbr.rel (%p610) target = $region52
      $region51: #{tpu_custom_call.1} parent=47 // pred_region
        %s613 = smul.u32 16, %s17
        %p614 = scmp.lt.s32.totalorder %s613, 31
        %s615 = scalar_select %p614, %s613, 31
        %s616 = smul.addr %s615, 8
        %s617 = scalar_lea.vmem %s5, %s616
      $region52: #{tpu_custom_call.1} parent=47 // pred_fallthru
        _
    $region48: #{tpu_custom_call.1} parent=5 // pred_fallthru
      _
  $region6: #{tpu_custom_call.1} parent=0 // loop_footer
    %s15 = sadd.s32 1, %s11
  $region7: #{tpu_custom_call.1} parent=0 // loop_footer_branch
    %10 = sbr.rel target = $region3
  $region8: #{tpu_custom_call.1} parent=0 // loop_exit
    _

</llo_original>
